<compile_context>
chip_gen: v7x
topology: tpu7x:2x2x1
jax: 0.10.0
libtpu: 0.0.40
codegen_flags: <defaults>
</compile_context>

<pallas_src>
import functools

import jax
import jax.numpy as jnp
from jax import lax
from jax.experimental import pallas as pl
from jax.experimental.pallas import tpu as pltpu

EPS_PPO = 1e-5
_LANES = 128


def _cdiv(a, b):
    return -(-a // b)


def _round_up(x, m):
    return _cdiv(x, m) * m


def _vmem_limit_bytes():
    """Generation-aware VMEM budget (v7x: 64 MiB/TC, v5e/v6e: 128 MiB)."""
    cap = 64 * 1024 * 1024  # conservative default (v7x per-TC)
    try:
        info = pltpu.get_tpu_info()
        c = getattr(info, "vmem_capacity_bytes", None)
        if c:
            cap = int(c)
    except Exception:
        pass
    # Leave headroom for Mosaic internal scratch; don't exceed 96 MiB even on
    # 128 MiB parts.
    return max(32 * 1024 * 1024, min(cap * 3 // 4, 96 * 1024 * 1024))


# ---------------------------------------------------------------------------
# Fast path: whole mini-batch resident in VMEM, single grid step.
# ---------------------------------------------------------------------------
def _ppo_fast_kernel(
    n_valid_ref,                              # scalar prefetch (SMEM int32[1])
    returns_ref, value_preds_ref, logp_ref, old_logp_ref, values_ref,
    entropy_ref,                              # inputs (full blocks, VMEM)
    adv_ref, loss_ref,                        # outputs
    *, clip_param, value_loss_coef, entropy_coef, lanes):
    rows = returns_ref.shape[0]
    row_i = lax.broadcasted_iota(jnp.int32, (rows, lanes), 0)
    lane_i = lax.broadcasted_iota(jnp.int32, (rows, lanes), 1)
    valid = row_i * lanes + lane_i < n_valid_ref[0]

    returns = returns_ref[...].astype(jnp.float32)
    adv = returns - value_preds_ref[...].astype(jnp.float32)

    # torch.var_mean over the finite entries only (unbiased, correction=1),
    # computed with a numerically safe centered two-pass formula.
    ok = jnp.logical_and(jnp.isfinite(adv), valid)
    okf = ok.astype(jnp.float32)
    n = jnp.maximum(jnp.sum(okf), 1.0)
    mean = jnp.sum(jnp.where(ok, adv, 0.0)) / n
    d = jnp.where(ok, adv - mean, 0.0)
    var = jnp.sum(d * d) / jnp.maximum(n - 1.0, 1.0)
    inv_std = lax.rsqrt(var + EPS_PPO)

    adv_n = (adv - mean) * inv_std
    adv_ref[...] = adv_n

    ratio = jnp.exp(logp_ref[...].astype(jnp.float32)
                    - old_logp_ref[...].astype(jnp.float32))
    surr1 = adv_n * ratio
    surr2 = adv_n * jnp.clip(ratio, 1.0 - clip_param, 1.0 + clip_param)
    a_elem = -jnp.minimum(surr1, surr2)

    diff = values_ref[...].astype(jnp.float32) - returns
    v_elem = 0.5 * diff * diff

    inv_n = 1.0 / jnp.maximum(n_valid_ref[0].astype(jnp.float32), 1.0)
    a = jnp.sum(jnp.where(valid, a_elem, 0.0)) * inv_n
    v = jnp.sum(jnp.where(valid, v_elem, 0.0)) * inv_n
    e = jnp.sum(
        jnp.where(valid, entropy_ref[...].astype(jnp.float32), 0.0)) * inv_n
    total = value_loss_coef * v + a - entropy_coef * e

    out_row = lax.broadcasted_iota(jnp.int32, (8, lanes), 0)
    loss_ref[...] = (jnp.where(out_row == 0, a, 0.0)
                     + jnp.where(out_row == 1, v, 0.0)
                     + jnp.where(out_row == 2, e, 0.0)
                     + jnp.where(out_row == 3, total, 0.0))


# ---------------------------------------------------------------------------
# Tiled fallback: (2, num_tiles) grid, streaming with vreg-sized accumulators.
# ---------------------------------------------------------------------------
def _ppo_tiled_kernel(
    n_valid_ref,                              # scalar prefetch (SMEM int32[1])
    returns_ref, value_preds_ref, logp_ref, old_logp_ref, values_ref,
    entropy_ref,                              # inputs (VMEM tiles)
    adv_ref, loss_ref,                        # outputs
    sum_acc, sumsq_acc, cnt_acc,              # phase-0 (8, lanes) accumulators
    aloss_acc, vloss_acc, ent_acc,            # phase-1 (8, lanes) accumulators
    stats_smem,                               # SMEM [shift, mean, inv_std, _]
    *, clip_param, value_loss_coef, entropy_coef, tile_rows, lanes):
    phase = pl.program_id(0)
    t = pl.program_id(1)
    num_tiles = pl.num_programs(1)
    sub = tile_rows // 8

    # Element-level validity mask (handles any row/lane padding).
    row = (t * tile_rows
           + lax.broadcasted_iota(jnp.int32, (tile_rows, lanes), 0))
    lane = lax.broadcasted_iota(jnp.int32, (tile_rows, lanes), 1)
    valid = row * lanes + lane < n_valid_ref[0]

    # ------------- phase 0: single-pass (shifted) advantage stats ----------
    @pl.when(phase == 0)
    def _():
        adv = (returns_ref[...].astype(jnp.float32)
               - value_preds_ref[...].astype(jnp.float32))
        ok = jnp.logical_and(jnp.isfinite(adv), valid)
        okf = ok.astype(jnp.float32)
        adv_m = jnp.where(ok, adv, 0.0)

        @pl.when(t == 0)
        def _():
            sum_acc[...] = jnp.zeros_like(sum_acc)
            sumsq_acc[...] = jnp.zeros_like(sumsq_acc)
            cnt_acc[...] = jnp.zeros_like(cnt_acc)
            # First-tile mean used as a shift so (ss - n*mean^2) doesn't
            # cancel catastrophically when |mean| >> std.
            stats_smem[0] = jnp.sum(adv_m) / jnp.maximum(jnp.sum(okf), 1.0)

        shift = stats_smem[0]
        d = jnp.where(ok, adv - shift, 0.0)
        # Fold each tile down to one vreg worth of partial sums (pure VALU).
        sum_acc[...] += jnp.sum(d.reshape(sub, 8, lanes), axis=0)
        sumsq_acc[...] += jnp.sum((d * d).reshape(sub, 8, lanes), axis=0)
        cnt_acc[...] += jnp.sum(okf.reshape(sub, 8, lanes), axis=0)

        @pl.when(t == num_tiles - 1)                # one XLU reduce at the end
        def _():
            n = jnp.maximum(jnp.sum(cnt_acc[...]), 1.0)
            s = jnp.sum(sum_acc[...])
            ss = jnp.sum(sumsq_acc[...])
            mean_d = s / n
            var = (jnp.maximum(ss - n * mean_d * mean_d, 0.0)
                   / jnp.maximum(n - 1.0, 1.0))       # unbiased, like torch
            stats_smem[1] = stats_smem[0] + mean_d
            stats_smem[2] = lax.rsqrt(var + EPS_PPO)

    # ------ phase 1: normalized advantages + PPO loss accumulation ---------
    @pl.when(phase == 1)
    def _():
        @pl.when(t == 0)
        def _():
            aloss_acc[...] = jnp.zeros_like(aloss_acc)
            vloss_acc[...] = jnp.zeros_like(vloss_acc)
            ent_acc[...] = jnp.zeros_like(ent_acc)

        mean = stats_smem[1]
        inv_std = stats_smem[2]

        returns = returns_ref[...].astype(jnp.float32)
        adv = returns - value_preds_ref[...].astype(jnp.float32)
        adv_n = (adv - mean) * inv_std
        adv_ref[...] = adv_n

        ratio = jnp.exp(logp_ref[...].astype(jnp.float32)
                        - old_logp_ref[...].astype(jnp.float32))
        surr1 = adv_n * ratio
        surr2 = adv_n * jnp.clip(ratio, 1.0 - clip_param, 1.0 + clip_param)
        a_elem = jnp.where(valid, -jnp.minimum(surr1, surr2), 0.0)

        diff = values_ref[...].astype(jnp.float32) - returns
        v_elem = jnp.where(valid, 0.5 * diff * diff, 0.0)
        e_elem = jnp.where(valid, entropy_ref[...].astype(jnp.float32), 0.0)

        aloss_acc[...] += jnp.sum(a_elem.reshape(sub, 8, lanes), axis=0)
        vloss_acc[...] += jnp.sum(v_elem.reshape(sub, 8, lanes), axis=0)
        ent_acc[...] += jnp.sum(e_elem.reshape(sub, 8, lanes), axis=0)

        @pl.when(t == num_tiles - 1)
        def _():
            inv_n = 1.0 / jnp.maximum(
                n_valid_ref[0].astype(jnp.float32), 1.0)
            a = jnp.sum(aloss_acc[...]) * inv_n
            v = jnp.sum(vloss_acc[...]) * inv_n
            e = jnp.sum(ent_acc[...]) * inv_n
            total = value_loss_coef * v + a - entropy_coef * e
            out_row = lax.broadcasted_iota(jnp.int32, (8, lanes), 0)
            loss_ref[...] = (jnp.where(out_row == 0, a, 0.0)
                             + jnp.where(out_row == 1, v, 0.0)
                             + jnp.where(out_row == 2, e, 0.0)
                             + jnp.where(out_row == 3, total, 0.0))


# ---------------------------------------------------------------------------
# Wrapper
# ---------------------------------------------------------------------------
def ppo_update_losses(returns, value_preds, action_log_probs,
                      old_action_log_probs, values, dist_entropy, *,
                      clip_param, value_loss_coef, entropy_coef,
                      tile_rows=None, force_tiled=False):
    """Fused get_advantages + PPO mini-batch loss.

    Accepts arbitrary (identical) input shapes; internally flattens to a
    lane-dense (rows, 128) layout (padded rows/lanes are masked out).

    Returns:
      normalized_advantages: same shape as `returns`, float32
      losses: (4,) float32 = [action_loss, value_loss, dist_entropy, total]
    """
    inputs = [returns, value_preds, action_log_probs, old_action_log_probs,
              values, dist_entropy]
    orig_shape = tuple(returns.shape)
    for x in inputs:
        assert tuple(x.shape) == orig_shape, (x.shape, orig_shape)
    n_valid = 1
    for d in orig_shape:
        n_valid *= int(d)

    def prep(x):
        x = jnp.asarray(x)
        if not jnp.issubdtype(x.dtype, jnp.floating):
            x = x.astype(jnp.float32)
        return jnp.ravel(x)

    flat = [prep(x) for x in inputs]
    lanes = _LANES
    rows_needed = max(1, _cdiv(n_valid, lanes))
    vmem_limit = _vmem_limit_bytes()

    # ---- choose path ------------------------------------------------------
    use_fast = (not force_tiled) and tile_rows is None
    if use_fast:
        rows_fast = _round_up(rows_needed, 16)
        # 6 inputs + adv out, worst-case double buffering + slack.
        use_fast = (14 * rows_fast * lanes * 4 + (2 << 20)) <= vmem_limit

    if use_fast:
        rows_p = _round_up(rows_needed, 16)
        num_tiles = 1
        tr = rows_p
    else:
        if tile_rows is not None:
            tr = _round_up(int(tile_rows), 8)
            num_tiles = max(1, _cdiv(rows_needed, tr))
        else:
            # 7 streams (6 in + adv out), double-buffered, f32.
            per_row = 7 * 2 * 4 * lanes
            budget = max(vmem_limit - (2 << 20), 1 << 20)
            cap_rows = max(16, (budget // per_row) // 16 * 16)
            num_tiles = max(1, _cdiv(rows_needed, cap_rows))
            tr = _round_up(_cdiv(rows_needed, num_tiles), 16)
        rows_p = tr * num_tiles

    total_elems = rows_p * lanes

    def pad2d(x):
        pad = total_elems - x.shape[0]
        if pad:
            x = jnp.concatenate([x, jnp.zeros((pad,), x.dtype)])
        return x.reshape(rows_p, lanes)

    inputs2d = [pad2d(x) for x in flat]
    n_valid_arr = jnp.asarray([n_valid], dtype=jnp.int32)

    if use_fast:
        kernel = functools.partial(
            _ppo_fast_kernel,
            clip_param=float(clip_param),
            value_loss_coef=float(value_loss_coef),
            entropy_coef=float(entropy_coef),
            lanes=lanes)
        full = pl.BlockSpec((rows_p, lanes), lambda i, nv: (0, 0))
        grid_spec = pltpu.PrefetchScalarGridSpec(
            num_scalar_prefetch=1,
            grid=(1,),
            in_specs=[full] * 6,
            out_specs=[full,
                       pl.BlockSpec((8, lanes), lambda i, nv: (0, 0))],
        )
        dims = ("arbitrary",)
    else:
        kernel = functools.partial(
            _ppo_tiled_kernel,
            clip_param=float(clip_param),
            value_loss_coef=float(value_loss_coef),
            entropy_coef=float(entropy_coef),
            tile_rows=tr, lanes=lanes)
        # returns / value_preds are streamed in both phases.  The other four
        # are only needed in phase 1: their index map pins block 0 during
        # phase 0 so no per-step DMA traffic is issued there.
        both = pl.BlockSpec((tr, lanes), lambda p, t, nv: (t, 0))
        p1 = pl.BlockSpec((tr, lanes), lambda p, t, nv: (t * p, 0))
        grid_spec = pltpu.PrefetchScalarGridSpec(
            num_scalar_prefetch=1,
            grid=(2, num_tiles),
            in_specs=[both, both, p1, p1, p1, p1],
            out_specs=[
                pl.BlockSpec((tr, lanes), lambda p, t, nv: (t * p, 0)),
                pl.BlockSpec((8, lanes), lambda p, t, nv: (0, 0)),
            ],
            scratch_shapes=[pltpu.VMEM((8, lanes), jnp.float32)] * 6
            + [pltpu.SMEM((4,), jnp.float32)],
        )
        dims = ("arbitrary", "arbitrary")
        # TODO(synk): on v7x the tile axis could be split across the 2
        # TensorCores with per-core partial sums + a tiny combine; single-TC
        # streaming is kept here for portability.

    adv2d, loss_tile = pl.pallas_call(
        kernel,
        grid_spec=grid_spec,
        out_shape=(
            jax.ShapeDtypeStruct((rows_p, lanes), jnp.float32),
            jax.ShapeDtypeStruct((8, lanes), jnp.float32),
        ),
        compiler_params=pltpu.CompilerParams(
            dimension_semantics=dims,
            vmem_limit_bytes=vmem_limit,
        ),
    )(n_valid_arr, *inputs2d)

    adv = adv2d.reshape(-1)[:n_valid].reshape(orig_shape)
    return adv, loss_tile[:4, 0]


# ---------------------------------------------------------------------------
# Plain-JAX reference (mirrors the PyTorch get_advantages + update() math).
# ---------------------------------------------------------------------------
def _reference(returns, value_preds, logp, old_logp, values, entropy,
               clip_param, value_loss_coef, entropy_coef):
    adv = returns - value_preds
    finite = jnp.isfinite(adv)
    n = jnp.sum(finite)
    adv_f = jnp.where(finite, adv, 0.0)
    mean = jnp.sum(adv_f) / n
    var = jnp.sum(jnp.where(finite, (adv - mean) ** 2, 0.0)) / (n - 1)
    adv_n = (adv - mean) * lax.rsqrt(var + EPS_PPO)

    ratio = jnp.exp(logp - old_logp)
    surr1 = adv_n * ratio
    surr2 = adv_n * jnp.clip(ratio, 1.0 - clip_param, 1.0 + clip_param)
    action_loss = jnp.mean(-jnp.minimum(surr1, surr2))
    value_loss = jnp.mean(0.5 * (values - returns) ** 2)
    ent = jnp.mean(entropy)
    total = value_loss_coef * value_loss + action_loss - entropy_coef * ent
    return adv_n, jnp.stack([action_loss, value_loss, ent, total])


if __name__ == "__main__":
    # PPO hyperparameters (as passed to PPO.__init__)
    clip_param = 0.2
    value_loss_coef = 0.5
    entropy_coef = 0.01
    # TODO(synk): actor_critic.evaluate_actions (the policy network itself) is
    # abstract in this module; its outputs are synthesized as kernel inputs.

    ROWS, LANES = 32, 128  # 4096 rollout steps, layout (ROWS, 128) f32
    key = jax.random.PRNGKey(0)
    k = jax.random.split(key, 6)
    returns = jax.random.normal(k[0], (ROWS, LANES), jnp.float32)
    value_preds = jax.random.normal(k[1], (ROWS, LANES), jnp.float32)
    action_log_probs = -jnp.abs(
        jax.random.normal(k[2], (ROWS, LANES), jnp.float32))
    old_action_log_probs = -jnp.abs(
        jax.random.normal(k[3], (ROWS, LANES), jnp.float32))
    values = jax.random.normal(k[4], (ROWS, LANES), jnp.float32)
    dist_entropy = jnp.abs(jax.random.normal(k[5], (ROWS, LANES), jnp.float32))

    # 1) VMEM-resident fast path (single grid step, 7S HBM bytes).
    adv_fast, losses_fast = ppo_update_losses(
        returns, value_preds, action_log_probs, old_action_log_probs, values,
        dist_entropy, clip_param=clip_param, value_loss_coef=value_loss_coef,
        entropy_coef=entropy_coef)
    adv_fast = jax.block_until_ready(adv_fast)
    losses_fast = jax.block_until_ready(losses_fast)

    # 2) Tiled streaming fallback (forced with tile_rows=8 -> grid (2, 4)) so
    #    the pipelined / accumulator path is also exercised at demo size.
    adv_tiled, losses_tiled = ppo_update_losses(
        returns, value_preds, action_log_probs, old_action_log_probs, values,
        dist_entropy, clip_param=clip_param, value_loss_coef=value_loss_coef,
        entropy_coef=entropy_coef, force_tiled=True, tile_rows=8)
    adv_tiled = jax.block_until_ready(adv_tiled)
    losses_tiled = jax.block_until_ready(losses_tiled)

    # Reference check
    adv_ref, losses_ref = _reference(returns, value_preds, action_log_probs,
                                     old_action_log_probs, values,
                                     dist_entropy, clip_param,
                                     value_loss_coef, entropy_coef)
    assert jnp.allclose(adv_fast, adv_ref, atol=2e-4, rtol=2e-4), \
        "fast-path advantages mismatch"
    assert jnp.allclose(losses_fast, losses_ref, atol=2e-4, rtol=2e-4), \
        "fast-path losses mismatch"
    assert jnp.allclose(adv_tiled, adv_ref, atol=2e-4, rtol=2e-4), \
        "tiled-path advantages mismatch"
    assert jnp.allclose(losses_tiled, losses_ref, atol=2e-4, rtol=2e-4), \
        "tiled-path losses mismatch"

    print("KERNEL_OK")
</pallas_src>

<mosaic_0001>
module attributes {stable_mosaic.version = 11 : i64} {
  func.func @_ppo_fast_kernel(%arg0: i32, %arg1: memref<1xi32, #tpu.memory_space<smem>>, %arg2: memref<32x128xf32, #tpu.memory_space<vmem>>, %arg3: memref<32x128xf32, #tpu.memory_space<vmem>>, %arg4: memref<32x128xf32, #tpu.memory_space<vmem>>, %arg5: memref<32x128xf32, #tpu.memory_space<vmem>>, %arg6: memref<32x128xf32, #tpu.memory_space<vmem>>, %arg7: memref<32x128xf32, #tpu.memory_space<vmem>>, %arg8: memref<32x128xf32, #tpu.memory_space<vmem>>, %arg9: memref<8x128xf32, #tpu.memory_space<vmem>>) attributes {dimension_semantics = [#tpu.dimension_semantics<arbitrary>], iteration_bounds = array<i64: 1>, scalar_prefetch = 1 : i64, scratch_operands = 0 : i64, tpu.core_type = #tpu.core_type<tc>, window_params = [{pipeline_mode = #tpu.pipeline_mode<synchronous>, transform_indices = @transform_0, window_bounds = array<i64: 32, 128>}, {pipeline_mode = #tpu.pipeline_mode<synchronous>, transform_indices = @transform_1, window_bounds = array<i64: 32, 128>}, {pipeline_mode = #tpu.pipeline_mode<synchronous>, transform_indices = @transform_2, window_bounds = array<i64: 32, 128>}, {pipeline_mode = #tpu.pipeline_mode<synchronous>, transform_indices = @transform_3, window_bounds = array<i64: 32, 128>}, {pipeline_mode = #tpu.pipeline_mode<synchronous>, transform_indices = @transform_4, window_bounds = array<i64: 32, 128>}, {pipeline_mode = #tpu.pipeline_mode<synchronous>, transform_indices = @transform_5, window_bounds = array<i64: 32, 128>}, {pipeline_mode = #tpu.pipeline_mode<synchronous>, transform_indices = @transform_6, window_bounds = array<i64: 32, 128>}, {pipeline_mode = #tpu.pipeline_mode<synchronous>, transform_indices = @transform_7, window_bounds = array<i64: 8, 128>}]} {
    %0 = tpu.iota {dimensions = array<i32: 0>} : vector<32x128xi32>
    %1 = tpu.iota {dimensions = array<i32: 1>} : vector<32x128xi32>
    %c128_i32 = arith.constant 128 : i32
    %2 = vector.broadcast %c128_i32 : i32 to vector<32x128xi32>
    %3 = arith.muli %0, %2 : vector<32x128xi32>
    %4 = arith.addi %3, %1 : vector<32x128xi32>
    %c0 = arith.constant 0 : index
    %5 = memref.load %arg1[%c0] : memref<1xi32, #tpu.memory_space<smem>>
    %6 = vector.broadcast %5 : i32 to vector<32x128xi32>
    %7 = arith.cmpi slt, %4, %6 : vector<32x128xi32>
    %c0_0 = arith.constant 0 : index
    %c0_1 = arith.constant 0 : index
    %8 = vector.load %arg2[%c0_0, %c0_1] : memref<32x128xf32, #tpu.memory_space<vmem>>, vector<32x128xf32>
    %c0_2 = arith.constant 0 : index
    %c0_3 = arith.constant 0 : index
    %9 = vector.load %arg3[%c0_2, %c0_3] : memref<32x128xf32, #tpu.memory_space<vmem>>, vector<32x128xf32>
    %10 = arith.subf %8, %9 : vector<32x128xf32>
    %11 = tpu.weird %10 : vector<32x128xf32> -> vector<32x128xi1>
    %cst = arith.constant dense<true> : vector<32x128xi1>
    %12 = arith.xori %11, %cst : vector<32x128xi1>
    %13 = arith.andi %12, %7 : vector<32x128xi1>
    %14 = arith.extui %13 : vector<32x128xi1> to vector<32x128xi32>
    %15 = arith.sitofp %14 : vector<32x128xi32> to vector<32x128xf32>
    %16 = vector.shape_cast %15 : vector<32x128xf32> to vector<1x32x128xf32>
    %cst_4 = arith.constant dense<0.000000e+00> : vector<1xf32>
    %17 = vector.multi_reduction <add>, %16, %cst_4 [1, 2] : vector<1x32x128xf32> to vector<1xf32>
    %18 = vector.shape_cast %17 : vector<1xf32> to vector<1x1x1xf32>
    %19 = vector.extract %18[0, 0, 0] : f32 from vector<1x1x1xf32>
    %cst_5 = arith.constant 1.000000e+00 : f32
    %20 = arith.maximumf %19, %cst_5 : f32
    %cst_6 = arith.constant 0.000000e+00 : f32
    %21 = vector.broadcast %cst_6 : f32 to vector<32x128xf32>
    %22 = arith.select %13, %10, %21 : vector<32x128xi1>, vector<32x128xf32>
    %23 = vector.shape_cast %22 : vector<32x128xf32> to vector<1x32x128xf32>
    %cst_7 = arith.constant dense<0.000000e+00> : vector<1xf32>
    %24 = vector.multi_reduction <add>, %23, %cst_7 [1, 2] : vector<1x32x128xf32> to vector<1xf32>
    %25 = vector.shape_cast %24 : vector<1xf32> to vector<1x1x1xf32>
    %26 = vector.extract %25[0, 0, 0] : f32 from vector<1x1x1xf32>
    %27 = arith.divf %26, %20 : f32
    %28 = vector.broadcast %27 : f32 to vector<32x128xf32>
    %29 = arith.subf %10, %28 : vector<32x128xf32>
    %cst_8 = arith.constant 0.000000e+00 : f32
    %30 = vector.broadcast %cst_8 : f32 to vector<32x128xf32>
    %31 = arith.select %13, %29, %30 : vector<32x128xi1>, vector<32x128xf32>
    %32 = arith.mulf %31, %31 : vector<32x128xf32>
    %33 = vector.shape_cast %32 : vector<32x128xf32> to vector<1x32x128xf32>
    %cst_9 = arith.constant dense<0.000000e+00> : vector<1xf32>
    %34 = vector.multi_reduction <add>, %33, %cst_9 [1, 2] : vector<1x32x128xf32> to vector<1xf32>
    %35 = vector.shape_cast %34 : vector<1xf32> to vector<1x1x1xf32>
    %36 = vector.extract %35[0, 0, 0] : f32 from vector<1x1x1xf32>
    %cst_10 = arith.constant 1.000000e+00 : f32
    %37 = arith.subf %20, %cst_10 : f32
    %cst_11 = arith.constant 1.000000e+00 : f32
    %38 = arith.maximumf %37, %cst_11 : f32
    %39 = arith.divf %36, %38 : f32
    %cst_12 = arith.constant 9.99999974E-6 : f32
    %40 = arith.addf %39, %cst_12 : f32
    %41 = math.rsqrt %40 : f32
    %42 = vector.broadcast %27 : f32 to vector<32x128xf32>
    %43 = arith.subf %10, %42 : vector<32x128xf32>
    %44 = vector.broadcast %41 : f32 to vector<32x128xf32>
    %45 = arith.mulf %43, %44 : vector<32x128xf32>
    %c0_13 = arith.constant 0 : index
    %c0_14 = arith.constant 0 : index
    %46 = vector.load %arg8[%c0_13, %c0_14] : memref<32x128xf32, #tpu.memory_space<vmem>>, vector<32x128xf32>
    tpu.vector_store %arg8[%c0_13, %c0_14], %45 {strides = array<i32>} : memref<32x128xf32, #tpu.memory_space<vmem>>, vector<32x128xf32>,
    %c0_15 = arith.constant 0 : index
    %c0_16 = arith.constant 0 : index
    %47 = vector.load %arg4[%c0_15, %c0_16] : memref<32x128xf32, #tpu.memory_space<vmem>>, vector<32x128xf32>
    %c0_17 = arith.constant 0 : index
    %c0_18 = arith.constant 0 : index
    %48 = vector.load %arg5[%c0_17, %c0_18] : memref<32x128xf32, #tpu.memory_space<vmem>>, vector<32x128xf32>
    %49 = arith.subf %47, %48 : vector<32x128xf32>
    %50 = math.exp %49 : vector<32x128xf32>
    %51 = arith.mulf %45, %50 : vector<32x128xf32>
    %cst_19 = arith.constant 8.000000e-01 : f32
    %cst_20 = arith.constant 1.200000e+00 : f32
    %52 = vector.broadcast %cst_19 : f32 to vector<32x128xf32>
    %53 = arith.maximumf %52, %50 : vector<32x128xf32>
    %54 = vector.broadcast %cst_20 : f32 to vector<32x128xf32>
    %55 = arith.minimumf %54, %53 : vector<32x128xf32>
    %56 = arith.mulf %45, %55 : vector<32x128xf32>
    %57 = arith.minimumf %51, %56 : vector<32x128xf32>
    %cst_21 = arith.constant 0.000000e+00 : f32
    %58 = vector.broadcast %cst_21 : f32 to vector<32x128xf32>
    %59 = arith.subf %58, %57 : vector<32x128xf32>
    %c0_22 = arith.constant 0 : index
    %c0_23 = arith.constant 0 : index
    %60 = vector.load %arg6[%c0_22, %c0_23] : memref<32x128xf32, #tpu.memory_space<vmem>>, vector<32x128xf32>
    %61 = arith.subf %60, %8 : vector<32x128xf32>
    %cst_24 = arith.constant 5.000000e-01 : f32
    %62 = vector.broadcast %cst_24 : f32 to vector<32x128xf32>
    %63 = arith.mulf %62, %61 : vector<32x128xf32>
    %64 = arith.mulf %63, %61 : vector<32x128xf32>
    %c0_25 = arith.constant 0 : index
    %65 = memref.load %arg1[%c0_25] : memref<1xi32, #tpu.memory_space<smem>>
    %66 = arith.sitofp %65 : i32 to f32
    %cst_26 = arith.constant 1.000000e+00 : f32
    %67 = arith.maximumf %66, %cst_26 : f32
    %cst_27 = arith.constant 1.000000e+00 : f32
    %68 = arith.divf %cst_27, %67 : f32
    %cst_28 = arith.constant 0.000000e+00 : f32
    %69 = vector.broadcast %cst_28 : f32 to vector<32x128xf32>
    %70 = arith.select %7, %59, %69 : vector<32x128xi1>, vector<32x128xf32>
    %71 = vector.shape_cast %70 : vector<32x128xf32> to vector<1x32x128xf32>
    %cst_29 = arith.constant dense<0.000000e+00> : vector<1xf32>
    %72 = vector.multi_reduction <add>, %71, %cst_29 [1, 2] : vector<1x32x128xf32> to vector<1xf32>
    %73 = vector.shape_cast %72 : vector<1xf32> to vector<1x1x1xf32>
    %74 = vector.extract %73[0, 0, 0] : f32 from vector<1x1x1xf32>
    %75 = arith.mulf %74, %68 : f32
    %cst_30 = arith.constant 0.000000e+00 : f32
    %76 = vector.broadcast %cst_30 : f32 to vector<32x128xf32>
    %77 = arith.select %7, %64, %76 : vector<32x128xi1>, vector<32x128xf32>
    %78 = vector.shape_cast %77 : vector<32x128xf32> to vector<1x32x128xf32>
    %cst_31 = arith.constant dense<0.000000e+00> : vector<1xf32>
    %79 = vector.multi_reduction <add>, %78, %cst_31 [1, 2] : vector<1x32x128xf32> to vector<1xf32>
    %80 = vector.shape_cast %79 : vector<1xf32> to vector<1x1x1xf32>
    %81 = vector.extract %80[0, 0, 0] : f32 from vector<1x1x1xf32>
    %82 = arith.mulf %81, %68 : f32
    %c0_32 = arith.constant 0 : index
    %c0_33 = arith.constant 0 : index
    %83 = vector.load %arg7[%c0_32, %c0_33] : memref<32x128xf32, #tpu.memory_space<vmem>>, vector<32x128xf32>
    %cst_34 = arith.constant 0.000000e+00 : f32
    %84 = vector.broadcast %cst_34 : f32 to vector<32x128xf32>
    %85 = arith.select %7, %83, %84 : vector<32x128xi1>, vector<32x128xf32>
    %86 = vector.shape_cast %85 : vector<32x128xf32> to vector<1x32x128xf32>
    %cst_35 = arith.constant dense<0.000000e+00> : vector<1xf32>
    %87 = vector.multi_reduction <add>, %86, %cst_35 [1, 2] : vector<1x32x128xf32> to vector<1xf32>
    %88 = vector.shape_cast %87 : vector<1xf32> to vector<1x1x1xf32>
    %89 = vector.extract %88[0, 0, 0] : f32 from vector<1x1x1xf32>
    %90 = arith.mulf %89, %68 : f32
    %cst_36 = arith.constant 5.000000e-01 : f32
    %91 = arith.mulf %cst_36, %82 : f32
    %92 = arith.addf %91, %75 : f32
    %cst_37 = arith.constant 0.00999999977 : f32
    %93 = arith.mulf %cst_37, %90 : f32
    %94 = arith.subf %92, %93 : f32
    %95 = tpu.iota {dimensions = array<i32: 0>} : vector<8x128xi32>
    %c0_i32 = arith.constant 0 : i32
    %96 = vector.broadcast %c0_i32 : i32 to vector<8x128xi32>
    %97 = arith.cmpi eq, %95, %96 : vector<8x128xi32>
    %cst_38 = arith.constant 0.000000e+00 : f32
    %98 = vector.broadcast %75 : f32 to vector<8x128xf32>
    %99 = vector.broadcast %cst_38 : f32 to vector<8x128xf32>
    %100 = arith.select %97, %98, %99 : vector<8x128xi1>, vector<8x128xf32>
    %c1_i32 = arith.constant 1 : i32
    %101 = vector.broadcast %c1_i32 : i32 to vector<8x128xi32>
    %102 = arith.cmpi eq, %95, %101 : vector<8x128xi32>
    %cst_39 = arith.constant 0.000000e+00 : f32
    %103 = vector.broadcast %82 : f32 to vector<8x128xf32>
    %104 = vector.broadcast %cst_39 : f32 to vector<8x128xf32>
    %105 = arith.select %102, %103, %104 : vector<8x128xi1>, vector<8x128xf32>
    %106 = arith.addf %100, %105 : vector<8x128xf32>
    %c2_i32 = arith.constant 2 : i32
    %107 = vector.broadcast %c2_i32 : i32 to vector<8x128xi32>
    %108 = arith.cmpi eq, %95, %107 : vector<8x128xi32>
    %cst_40 = arith.constant 0.000000e+00 : f32
    %109 = vector.broadcast %90 : f32 to vector<8x128xf32>
    %110 = vector.broadcast %cst_40 : f32 to vector<8x128xf32>
    %111 = arith.select %108, %109, %110 : vector<8x128xi1>, vector<8x128xf32>
    %112 = arith.addf %106, %111 : vector<8x128xf32>
    %c3_i32 = arith.constant 3 : i32
    %113 = vector.broadcast %c3_i32 : i32 to vector<8x128xi32>
    %114 = arith.cmpi eq, %95, %113 : vector<8x128xi32>
    %cst_41 = arith.constant 0.000000e+00 : f32
    %115 = vector.broadcast %94 : f32 to vector<8x128xf32>
    %116 = vector.broadcast %cst_41 : f32 to vector<8x128xf32>
    %117 = arith.select %114, %115, %116 : vector<8x128xi1>, vector<8x128xf32>
    %118 = arith.addf %112, %117 : vector<8x128xf32>
    %c0_42 = arith.constant 0 : index
    %c0_43 = arith.constant 0 : index
    %119 = vector.load %arg9[%c0_42, %c0_43] : memref<8x128xf32, #tpu.memory_space<vmem>>, vector<8x128xf32>
    tpu.vector_store %arg9[%c0_42, %c0_43], %118 {strides = array<i32>} : memref<8x128xf32, #tpu.memory_space<vmem>>, vector<8x128xf32>,
    return
  }
  func.func @transform_0(%arg0: i32, %arg1: memref<1xi32, #tpu.memory_space<smem>>) -> (i32, i32) {
    %c0_i32 = arith.constant 0 : i32
    %c0_i32_0 = arith.constant 0 : i32
    %c0_i32_1 = arith.constant 0 : i32
    return %c0_i32, %c0_i32_0 : i32, i32
  }
  func.func @transform_1(%arg0: i32, %arg1: memref<1xi32, #tpu.memory_space<smem>>) -> (i32, i32) {
    %c0_i32 = arith.constant 0 : i32
    %c0_i32_0 = arith.constant 0 : i32
    %c0_i32_1 = arith.constant 0 : i32
    return %c0_i32, %c0_i32_0 : i32, i32
  }
  func.func @transform_2(%arg0: i32, %arg1: memref<1xi32, #tpu.memory_space<smem>>) -> (i32, i32) {
    %c0_i32 = arith.constant 0 : i32
    %c0_i32_0 = arith.constant 0 : i32
    %c0_i32_1 = arith.constant 0 : i32
    return %c0_i32, %c0_i32_0 : i32, i32
  }
  func.func @transform_3(%arg0: i32, %arg1: memref<1xi32, #tpu.memory_space<smem>>) -> (i32, i32) {
    %c0_i32 = arith.constant 0 : i32
    %c0_i32_0 = arith.constant 0 : i32
    %c0_i32_1 = arith.constant 0 : i32
    return %c0_i32, %c0_i32_0 : i32, i32
  }
  func.func @transform_4(%arg0: i32, %arg1: memref<1xi32, #tpu.memory_space<smem>>) -> (i32, i32) {
    %c0_i32 = arith.constant 0 : i32
    %c0_i32_0 = arith.constant 0 : i32
    %c0_i32_1 = arith.constant 0 : i32
    return %c0_i32, %c0_i32_0 : i32, i32
  }
  func.func @transform_5(%arg0: i32, %arg1: memref<1xi32, #tpu.memory_space<smem>>) -> (i32, i32) {
    %c0_i32 = arith.constant 0 : i32
    %c0_i32_0 = arith.constant 0 : i32
    %c0_i32_1 = arith.constant 0 : i32
    return %c0_i32, %c0_i32_0 : i32, i32
  }
  func.func @transform_6(%arg0: i32, %arg1: memref<1xi32, #tpu.memory_space<smem>>) -> (i32, i32) {
    %c0_i32 = arith.constant 0 : i32
    %c0_i32_0 = arith.constant 0 : i32
    %c0_i32_1 = arith.constant 0 : i32
    return %c0_i32, %c0_i32_0 : i32, i32
  }
  func.func @transform_7(%arg0: i32, %arg1: memref<1xi32, #tpu.memory_space<smem>>) -> (i32, i32) {
    %c0_i32 = arith.constant 0 : i32
    %c0_i32_0 = arith.constant 0 : i32
    %c0_i32_1 = arith.constant 0 : i32
    return %c0_i32, %c0_i32_0 : i32, i32
  }
}

</mosaic_0001>

<llo_original>
// kernel: tpu_custom_call.1
$region0: #{tpu_custom_call.1}
  #allocation0 [shape = 'u32[]', space=smem, size = 0x4, offset = 0x4, fixed_abs, tag = 'smem constant byte address 0x4 - core index']
  #allocation1 [shape = 'u32[144,128]{1,0:T(1,128)}', space=vmem, size = 0x12000, scoped, tag = 'internal scratch']
  #allocation2 [shape = 's32[1]{0}', space=sflag, size = 0x4, scoped, tag = 'scoped memory for tpu_custom_call.1']
  #allocation3 [shape = 's32[1]{0:T(128)S(6)}', space=smem, size = 0x200, scoped, tag = 'prefetched SMEM operand 0']
  %s0 = inlined_call_operand.<no memory space> [shape: s32[1], index: 0, kind: input, shape index: {}]
  %s1 = inlined_call_operand.hbm [shape: f32[32,128], index: 1, kind: input, shape index: {}]
  %s2 = inlined_call_operand.hbm [shape: f32[32,128], index: 2, kind: input, shape index: {}]
  %s3 = inlined_call_operand.hbm [shape: f32[32,128], index: 3, kind: input, shape index: {}]
  %s4 = inlined_call_operand.hbm [shape: f32[32,128], index: 4, kind: input, shape index: {}]
  %s5 = inlined_call_operand.hbm [shape: f32[32,128], index: 5, kind: input, shape index: {}]
  %s6 = inlined_call_operand.hbm [shape: f32[32,128], index: 6, kind: input, shape index: {}]
  %s7 = inlined_call_operand.hbm [shape: f32[32,128], index: 7, kind: output, shape index: {0}]
  %s8 = inlined_call_operand.hbm [shape: f32[8,128], index: 8, kind: output, shape index: {1}]
  %9 = xla_tuple %s7, %s8
  %s10 = sld [smem:[#allocation0]]
  $region66: #{tpu_custom_call.1} parent=0
    _
  %s12 = ssub.s32 1, %s10
  %s13 = scalar_select 0, %s12, %s10
  %14 = sst [smem:[#allocation3]] %s0
  $region1: #{tpu_custom_call.1} parent=0
    #allocation4 [shape = 'u8[16384]{0}', space=vmem, size = 0x4000, scoped, tag = 'input window, operand 1, single buffered']
    #allocation5 [shape = 's32[1]{0}', space=sflag, size = 0x4, scoped, tag = 'scoped memory for tpu_custom_call.1']
    #allocation6 [shape = 's32[1]{0}', space=sflag, size = 0x4, scoped, tag = 'scoped memory for tpu_custom_call.1']
    #allocation7 [shape = 'u8[16384]{0}', space=vmem, size = 0x4000, scoped, tag = 'input window, operand 2, single buffered']
    #allocation8 [shape = 's32[1]{0}', space=sflag, size = 0x4, scoped, tag = 'scoped memory for tpu_custom_call.1']
    #allocation9 [shape = 'u8[16384]{0}', space=vmem, size = 0x4000, scoped, tag = 'input window, operand 3, single buffered']
    #allocation10 [shape = 'u8[16384]{0}', space=vmem, size = 0x4000, scoped, tag = 'input window, operand 4, single buffered']
    #allocation11 [shape = 's32[1]{0}', space=sflag, size = 0x4, scoped, tag = 'scoped memory for tpu_custom_call.1']
    #allocation12 [shape = 'u8[16384]{0}', space=vmem, size = 0x4000, scoped, tag = 'input window, operand 5, single buffered']
    #allocation13 [shape = 'u8[16384]{0}', space=vmem, size = 0x4000, scoped, tag = 'input window, operand 6, single buffered']
    #allocation14 [shape = 's32[1]{0}', space=sflag, size = 0x4, scoped, tag = 'scoped memory for tpu_custom_call.1']
    #allocation15 [shape = 'u8[16384]{0}', space=vmem, size = 0x4000, scoped, tag = 'output window, operand 0, single buffered']
    #allocation16 [shape = 'u8[4096]{0}', space=vmem, size = 0x1000, scoped, tag = 'output window, operand 1, single buffered']
    #allocation17 [shape = 's32[1]{0}', space=sflag, size = 0x4, scoped, tag = 'scoped memory for tpu_custom_call.1']
    %15 = vsyncpa [#allocation5], 0
    %16 = vsyncpa [#allocation8], 0
    %17 = vsyncpa [#allocation11], 0
    %18 = vsyncpa [#allocation14], 0
    %19 = vsyncpa [#allocation6], 0
    %20 = vsyncpa [#allocation17], 0
    // Predicated region
    $region2: #{tpu_custom_call.1} parent=1 // pred_check
      _
    $region3: #{tpu_custom_call.1} parent=1 // pred_check_branch
      %22 = sbr.rel (0) target = $region5
    $region4: #{tpu_custom_call.1} parent=1 // pred_region
      %s24 = ssub.s32 512, 512
      %25 = vsyncadd [#allocation5], %s24
      %s26 = sshll.u32 [#allocation4], 4
      %s27 = int_to_ptr.vmem [resolvable:$true] %s26
      %32 = dma.hbm_to_vmem [thread:$0]  %s1, 512, %s27, [#allocation5], 128, 128, 8
    $region5: #{tpu_custom_call.1} parent=1 // pred_fallthru
      _
    // Predicated region
    $region6: #{tpu_custom_call.1} parent=1 // pred_check
      _
    $region7: #{tpu_custom_call.1} parent=1 // pred_check_branch
      %34 = sbr.rel (0) target = $region9
    $region8: #{tpu_custom_call.1} parent=1 // pred_region
      %s36 = ssub.s32 512, 512
      %37 = vsyncadd [#allocation8], %s36
      %s38 = sshll.u32 [#allocation7], 4
      %s39 = int_to_ptr.vmem [resolvable:$true] %s38
      %44 = dma.hbm_to_vmem [thread:$0]  %s2, 512, %s39, [#allocation8], 128, 128, 8
    $region9: #{tpu_custom_call.1} parent=1 // pred_fallthru
      _
    // Predicated region
    $region10: #{tpu_custom_call.1} parent=1 // pred_check
      _
    $region11: #{tpu_custom_call.1} parent=1 // pred_check_branch
      %46 = sbr.rel (0) target = $region13
    $region12: #{tpu_custom_call.1} parent=1 // pred_region
      %s48 = ssub.s32 512, 512
      %49 = vsyncadd [#allocation8], %s48
      %s50 = sshll.u32 [#allocation9], 4
      %s51 = int_to_ptr.vmem [resolvable:$true] %s50
      %56 = dma.hbm_to_vmem [thread:$0]  %s3, 512, %s51, [#allocation8], 128, 128, 8
    $region13: #{tpu_custom_call.1} parent=1 // pred_fallthru
      _
    // Predicated region
    $region14: #{tpu_custom_call.1} parent=1 // pred_check
      _
    $region15: #{tpu_custom_call.1} parent=1 // pred_check_branch
      %58 = sbr.rel (0) target = $region17
    $region16: #{tpu_custom_call.1} parent=1 // pred_region
      %s60 = ssub.s32 512, 512
      %61 = vsyncadd [#allocation11], %s60
      %s62 = sshll.u32 [#allocation10], 4
      %s63 = int_to_ptr.vmem [resolvable:$true] %s62
      %68 = dma.hbm_to_vmem [thread:$0]  %s4, 512, %s63, [#allocation11], 128, 128, 8
    $region17: #{tpu_custom_call.1} parent=1 // pred_fallthru
      _
    // Predicated region
    $region18: #{tpu_custom_call.1} parent=1 // pred_check
      _
    $region19: #{tpu_custom_call.1} parent=1 // pred_check_branch
      %70 = sbr.rel (0) target = $region21
    $region20: #{tpu_custom_call.1} parent=1 // pred_region
      %s72 = ssub.s32 512, 512
      %73 = vsyncadd [#allocation11], %s72
      %s74 = sshll.u32 [#allocation12], 4
      %s75 = int_to_ptr.vmem [resolvable:$true] %s74
      %80 = dma.hbm_to_vmem [thread:$0]  %s5, 512, %s75, [#allocation11], 128, 128, 8
    $region21: #{tpu_custom_call.1} parent=1 // pred_fallthru
      _
    // Predicated region
    $region22: #{tpu_custom_call.1} parent=1 // pred_check
      _
    $region23: #{tpu_custom_call.1} parent=1 // pred_check_branch
      %82 = sbr.rel (0) target = $region25
    $region24: #{tpu_custom_call.1} parent=1 // pred_region
      %s84 = ssub.s32 512, 512
      %85 = vsyncadd [#allocation14], %s84
      %s86 = sshll.u32 [#allocation13], 4
      %s87 = int_to_ptr.vmem [resolvable:$true] %s86
      %92 = dma.hbm_to_vmem [thread:$0]  %s6, 512, %s87, [#allocation14], 128, 128, 8
    $region25: #{tpu_custom_call.1} parent=1 // pred_fallthru
      _
    // Predicated region
    $region26: #{tpu_custom_call.1} parent=1 // pred_check
      _
    $region27: #{tpu_custom_call.1} parent=1 // pred_check_branch
      %94 = sbr.rel (0) target = $region29
    $region28: #{tpu_custom_call.1} parent=1 // pred_region
      %95 = dma.done [#allocation5], 512
    $region29: #{tpu_custom_call.1} parent=1 // pred_fallthru
      _
    // Predicated region
    $region30: #{tpu_custom_call.1} parent=1 // pred_check
      _
    $region31: #{tpu_custom_call.1} parent=1 // pred_check_branch
      %97 = sbr.rel (0) target = $region33
    $region32: #{tpu_custom_call.1} parent=1 // pred_region
      %98 = dma.done [#allocation8], 512
    $region33: #{tpu_custom_call.1} parent=1 // pred_fallthru
      _
    // Predicated region
    $region34: #{tpu_custom_call.1} parent=1 // pred_check
      _
    $region35: #{tpu_custom_call.1} parent=1 // pred_check_branch
      %100 = sbr.rel (0) target = $region37
    $region36: #{tpu_custom_call.1} parent=1 // pred_region
      %101 = dma.done [#allocation8], 512
    $region37: #{tpu_custom_call.1} parent=1 // pred_fallthru
      _
    // Predicated region
    $region38: #{tpu_custom_call.1} parent=1 // pred_check
      _
    $region39: #{tpu_custom_call.1} parent=1 // pred_check_branch
      %103 = sbr.rel (0) target = $region41
    $region40: #{tpu_custom_call.1} parent=1 // pred_region
      %104 = dma.done [#allocation11], 512
    $region41: #{tpu_custom_call.1} parent=1 // pred_fallthru
      _
    // Predicated region
    $region42: #{tpu_custom_call.1} parent=1 // pred_check
      _
    $region43: #{tpu_custom_call.1} parent=1 // pred_check_branch
      %106 = sbr.rel (0) target = $region45
    $region44: #{tpu_custom_call.1} parent=1 // pred_region
      %107 = dma.done [#allocation11], 512
    $region45: #{tpu_custom_call.1} parent=1 // pred_fallthru
      _
    // Predicated region
    $region46: #{tpu_custom_call.1} parent=1 // pred_check
      _
    $region47: #{tpu_custom_call.1} parent=1 // pred_check_branch
      %109 = sbr.rel (0) target = $region49
    $region48: #{tpu_custom_call.1} parent=1 // pred_region
      %110 = dma.done [#allocation14], 512
    $region49: #{tpu_custom_call.1} parent=1 // pred_fallthru
      _
    %v111 = vlaneseq
    %v112 = vshrl.u32 %v111, 7
    %v113 = vadd.s32 %v112, 8
    %v114 = vadd.s32 %v112, 16
    %v115 = vadd.s32 %v112, 24
    %v116 = vlaneseq
    %v117 = vand.u32 %v116, 127
    %v118 = vmul.u32 %v112, 128
    %v119 = vmul.u32 %v113, 128
    %v120 = vmul.u32 %v114, 128
    %v121 = vmul.u32 %v115, 128
    %v122 = vadd.s32 %v118, %v117
    %v123 = vadd.s32 %v119, %v117
    %v124 = vadd.s32 %v120, %v117
    %v125 = vadd.s32 %v121, %v117
    %s126 = sld [smem:[#allocation3]]
    %v127 = vstv %s126
    %vm128 = vcmp.lt.s32.totalorder %v122, %v127
    %vm129 = vcmp.lt.s32.totalorder %v123, %v127
    %vm130 = vcmp.lt.s32.totalorder %v124, %v127
    %vm131 = vcmp.lt.s32.totalorder %v125, %v127
    %v132 = vld [vmem:[#allocation4] sm:$0xff]
    %v133 = vld [vmem:[#allocation4 + $0x8] sm:$0xff]
    %v134 = vld [vmem:[#allocation4 + $0x10] sm:$0xff]
    %v135 = vld [vmem:[#allocation4 + $0x18] sm:$0xff]
    %v136 = vld [vmem:[#allocation7] sm:$0xff]
    %v137 = vld [vmem:[#allocation7 + $0x8] sm:$0xff]
    %v138 = vld [vmem:[#allocation7 + $0x10] sm:$0xff]
    %v139 = vld [vmem:[#allocation7 + $0x18] sm:$0xff]
    %v140 = vsub.f32 %v132, %v136
    %v141 = vsub.f32 %v133, %v137
    %v142 = vsub.f32 %v134, %v138
    %v143 = vsub.f32 %v135, %v139
    %vm144 = vweird.f32 %v140
    %vm145 = vweird.f32 %v141
    %vm146 = vweird.f32 %v142
    %vm147 = vweird.f32 %v143
    %vm148 = vmxor %vm144, 1
    %vm149 = vmxor %vm145, 1
    %vm150 = vmxor %vm146, 1
    %vm151 = vmxor %vm147, 1
    %vm152 = vmand %vm148, %vm128
    %vm153 = vmand %vm149, %vm129
    %vm154 = vmand %vm150, %vm130
    %vm155 = vmand %vm151, %vm131
    %v156 = vsel %vm152, 1, 0
    %v157 = vsel %vm153, 1, 0
    %v158 = vsel %vm154, 1, 0
    %v159 = vsel %vm155, 1, 0
    %v160 = vcvt.s32.f32 %v156
    %v161 = vcvt.s32.f32 %v157
    %v162 = vcvt.s32.f32 %v158
    %v163 = vcvt.s32.f32 %v159
    %v164 = vadd.f32 %v160, %v161
    %v165 = vadd.f32 %v164, %v162
    %v166 = vadd.f32 %v165, %v163
    %167 = vadd.xlane.f32.xlu0 %v166
    %v168 = vpop.xlane.xlu0 %167
    %v169 = vrot.slane %v168, 4
    %v170 = vadd.f32 %v168, %v169
    %v171 = vrot.slane %v170, 2
    %v172 = vadd.f32 %v170, %v171
    %v173 = vrot.slane %v172, 1
    %v174 = vadd.f32 %v172, %v173
    %s175 = vtos %v174
    %s176 = smax.f32 %s175, 1.0
    %v177 = vsel %vm152, %v140, 0.0
    %v178 = vsel %vm153, %v141, 0.0
    %v179 = vsel %vm154, %v142, 0.0
    %v180 = vsel %vm155, %v143, 0.0
    %v181 = vadd.f32 %v177, %v178
    %v182 = vadd.f32 %v181, %v179
    %v183 = vadd.f32 %v182, %v180
    %184 = vadd.xlane.f32.xlu0 %v183
    %v185 = vpop.xlane.xlu0 %184
    %v186 = vrot.slane %v185, 4
    %v187 = vadd.f32 %v185, %v186
    %v188 = vrot.slane %v187, 2
    %v189 = vadd.f32 %v187, %v188
    %v190 = vrot.slane %v189, 1
    %v191 = vadd.f32 %v189, %v190
    %s192 = vtos %v191
    %v193 = vstv %s176
    %v194 = vrcp.pop %v193
    %s195 = vtos %v194
    %s196 = smul.f32 %s192, %s195
    %v197 = vstv %s196
    %v198 = vsub.f32 %v140, %v197
    %v199 = vsub.f32 %v141, %v197
    %v200 = vsub.f32 %v142, %v197
    %v201 = vsub.f32 %v143, %v197
    %v202 = vsel %vm152, %v198, 0.0
    %v203 = vsel %vm153, %v199, 0.0
    %v204 = vsel %vm154, %v200, 0.0
    %v205 = vsel %vm155, %v201, 0.0
    %v206 = vmul.f32 %v202, %v202
    %v207 = vmul.f32 %v203, %v203
    %v208 = vmul.f32 %v204, %v204
    %v209 = vmul.f32 %v205, %v205
    %v210 = vadd.f32 %v206, %v207
    %v211 = vadd.f32 %v210, %v208
    %v212 = vadd.f32 %v211, %v209
    %213 = vadd.xlane.f32.xlu0 %v212
    %v214 = vpop.xlane.xlu0 %213
    %v215 = vrot.slane %v214, 4
    %v216 = vadd.f32 %v214, %v215
    %v217 = vrot.slane %v216, 2
    %v218 = vadd.f32 %v216, %v217
    %v219 = vrot.slane %v218, 1
    %v220 = vadd.f32 %v218, %v219
    %s221 = vtos %v220
    %s222 = ssub.f32 %s176, 1.0
    %s223 = smax.f32 %s222, 1.0
    %v224 = vstv %s223
    %v225 = vrcp.pop %v224
    %s226 = vtos %v225
    %s227 = smul.f32 %s221, %s226
    %s228 = sadd.f32 %s227, 1e-05
    %v229 = vstv %s228
    %v230 = vrsqrt.pop %v229
    %s231 = vtos %v230
    %v232 = vstv %s231
    %v233 = vmul.f32 %v198, %v232
    %v234 = vmul.f32 %v199, %v232
    %v235 = vmul.f32 %v200, %v232
    %v236 = vmul.f32 %v201, %v232
    %237 = vst [vmem:[#allocation15] sm:$0xff] %v233
    %238 = vst [vmem:[#allocation15 + $0x8] sm:$0xff] %v234
    %239 = vst [vmem:[#allocation15 + $0x10] sm:$0xff] %v235
    %240 = vst [vmem:[#allocation15 + $0x18] sm:$0xff] %v236
    %v241 = vld [vmem:[#allocation9] sm:$0xff]
    %v242 = vld [vmem:[#allocation9 + $0x8] sm:$0xff]
    %v243 = vld [vmem:[#allocation9 + $0x10] sm:$0xff]
    %v244 = vld [vmem:[#allocation9 + $0x18] sm:$0xff]
    %v245 = vld [vmem:[#allocation10] sm:$0xff]
    %v246 = vld [vmem:[#allocation10 + $0x8] sm:$0xff]
    %v247 = vld [vmem:[#allocation10 + $0x10] sm:$0xff]
    %v248 = vld [vmem:[#allocation10 + $0x18] sm:$0xff]
    %v249 = vsub.f32 %v241, %v245
    %v250 = vsub.f32 %v242, %v246
    %v251 = vsub.f32 %v243, %v247
    %v252 = vsub.f32 %v244, %v248
    %v253 = vmul.f32 %v249, 1.442695
    %v254 = vpow.pop %v253
    %v255 = vmul.f32 %v250, 1.442695
    %v256 = vpow.pop %v255
    %v257 = vmul.f32 %v251, 1.442695
    %v258 = vpow.pop %v257
    %v259 = vmul.f32 %v252, 1.442695
    %v260 = vpow.pop %v259
    %v261 = vmul.f32 %v233, %v254
    %v262 = vmul.f32 %v234, %v256
    %v263 = vmul.f32 %v235, %v258
    %v264 = vmul.f32 %v236, %v260
    %v265 = vmax.f32 %v254, 0.8
    %v266 = vmax.f32 %v256, 0.8
    %v267 = vmax.f32 %v258, 0.8
    %v268 = vmax.f32 %v260, 0.8
    %v269 = vmin.f32 %v265, 1.2
    %v270 = vmin.f32 %v266, 1.2
    %v271 = vmin.f32 %v267, 1.2
    %v272 = vmin.f32 %v268, 1.2
    %v273 = vmul.f32 %v233, %v269
    %v274 = vmul.f32 %v234, %v270
    %v275 = vmul.f32 %v235, %v271
    %v276 = vmul.f32 %v236, %v272
    %v277 = vmin.f32 %v261, %v273
    %v278 = vmin.f32 %v262, %v274
    %v279 = vmin.f32 %v263, %v275
    %v280 = vmin.f32 %v264, %v276
    %v281 = vsub.f32 0.0, %v277
    %v282 = vsub.f32 0.0, %v278
    %v283 = vsub.f32 0.0, %v279
    %v284 = vsub.f32 0.0, %v280
    %v285 = vld [vmem:[#allocation12] sm:$0xff]
    %v286 = vld [vmem:[#allocation12 + $0x8] sm:$0xff]
    %v287 = vld [vmem:[#allocation12 + $0x10] sm:$0xff]
    %v288 = vld [vmem:[#allocation12 + $0x18] sm:$0xff]
    %v289 = vsub.f32 %v285, %v132
    %v290 = vsub.f32 %v286, %v133
    %v291 = vsub.f32 %v287, %v134
    %v292 = vsub.f32 %v288, %v135
    %v293 = vmul.f32 %v289, 0.5
    %v294 = vmul.f32 %v290, 0.5
    %v295 = vmul.f32 %v291, 0.5
    %v296 = vmul.f32 %v292, 0.5
    %v297 = vmul.f32 %v293, %v289
    %v298 = vmul.f32 %v294, %v290
    %v299 = vmul.f32 %v295, %v291
    %v300 = vmul.f32 %v296, %v292
    %s301 = sld [smem:[#allocation3]]
    %s302 = scvt.s32.f32 %s301
    %s303 = smax.f32 %s302, 1.0
    %v304 = vstv %s303
    %v305 = vrcp.pop %v304
    %s306 = vtos %v305
    %v307 = vsel %vm128, %v281, 0.0
    %v308 = vsel %vm129, %v282, 0.0
    %v309 = vsel %vm130, %v283, 0.0
    %v310 = vsel %vm131, %v284, 0.0
    %v311 = vadd.f32 %v307, %v308
    %v312 = vadd.f32 %v311, %v309
    %v313 = vadd.f32 %v312, %v310
    %314 = vadd.xlane.f32.xlu0 %v313
    %v315 = vpop.xlane.xlu0 %314
    %v316 = vrot.slane %v315, 4
    %v317 = vadd.f32 %v315, %v316
    %v318 = vrot.slane %v317, 2
    %v319 = vadd.f32 %v317, %v318
    %v320 = vrot.slane %v319, 1
    %v321 = vadd.f32 %v319, %v320
    %s322 = vtos %v321
    %s323 = smul.f32 %s322, %s306
    %v324 = vsel %vm128, %v297, 0.0
    %v325 = vsel %vm129, %v298, 0.0
    %v326 = vsel %vm130, %v299, 0.0
    %v327 = vsel %vm131, %v300, 0.0
    %v328 = vadd.f32 %v324, %v325
    %v329 = vadd.f32 %v328, %v326
    %v330 = vadd.f32 %v329, %v327
    %331 = vadd.xlane.f32.xlu0 %v330
    %v332 = vpop.xlane.xlu0 %331
    %v333 = vrot.slane %v332, 4
    %v334 = vadd.f32 %v332, %v333
    %v335 = vrot.slane %v334, 2
    %v336 = vadd.f32 %v334, %v335
    %v337 = vrot.slane %v336, 1
    %v338 = vadd.f32 %v336, %v337
    %s339 = vtos %v338
    %s340 = smul.f32 %s339, %s306
    %v341 = vld [vmem:[#allocation13] sm:$0xff]
    %v342 = vld [vmem:[#allocation13 + $0x8] sm:$0xff]
    %v343 = vld [vmem:[#allocation13 + $0x10] sm:$0xff]
    %v344 = vld [vmem:[#allocation13 + $0x18] sm:$0xff]
    %v345 = vsel %vm128, %v341, 0.0
    %v346 = vsel %vm129, %v342, 0.0
    %v347 = vsel %vm130, %v343, 0.0
    %v348 = vsel %vm131, %v344, 0.0
    %v349 = vadd.f32 %v345, %v346
    %v350 = vadd.f32 %v349, %v347
    %v351 = vadd.f32 %v350, %v348
    %352 = vadd.xlane.f32.xlu0 %v351
    %v353 = vpop.xlane.xlu0 %352
    %v354 = vrot.slane %v353, 4
    %v355 = vadd.f32 %v353, %v354
    %v356 = vrot.slane %v355, 2
    %v357 = vadd.f32 %v355, %v356
    %v358 = vrot.slane %v357, 1
    %v359 = vadd.f32 %v357, %v358
    %s360 = vtos %v359
    %s361 = smul.f32 %s360, %s306
    %s362 = smul.f32 %s340, 0.5
    %s363 = sadd.f32 %s362, %s323
    %s364 = smul.f32 %s361, 0.01
    %s365 = ssub.f32 %s363, %s364
    %vm366 = vcmp.eq.s32.totalorder %v112, 0
    %v367 = vstv %s323
    %v368 = vsel %vm366, %v367, 0.0
    %vm369 = vcmp.eq.s32.totalorder %v112, 1
    %v370 = vstv %s340
    %v371 = vsel %vm369, %v370, 0.0
    %v372 = vadd.f32 %v368, %v371
    %vm373 = vcmp.eq.s32.totalorder %v112, 2
    %v374 = vstv %s361
    %v375 = vsel %vm373, %v374, 0.0
    %v376 = vadd.f32 %v372, %v375
    %vm377 = vcmp.eq.s32.totalorder %v112, 3
    %v378 = vstv %s365
    %v379 = vsel %vm377, %v378, 0.0
    %v380 = vadd.f32 %v376, %v379
    %381 = vst [vmem:[#allocation16] sm:$0xff] %v380
    // Predicated region
    $region50: #{tpu_custom_call.1} parent=1 // pred_check
      _
    $region51: #{tpu_custom_call.1} parent=1 // pred_check_branch
      %383 = sbr.rel (0) target = $region53
    $region52: #{tpu_custom_call.1} parent=1 // pred_region
      %s385 = ssub.s32 512, 512
      %386 = vsyncadd [#allocation6], %s385
      %s387 = sshll.u32 [#allocation15], 4
      %s388 = int_to_ptr.vmem [resolvable:$true] %s387
      %393 = dma.vmem_to_hbm [thread:$0]  %s388, 512, %s7, [#allocation6], 128, 128, 8
    $region53: #{tpu_custom_call.1} parent=1 // pred_fallthru
      _
    // Predicated region
    $region54: #{tpu_custom_call.1} parent=1 // pred_check
      _
    $region55: #{tpu_custom_call.1} parent=1 // pred_check_branch
      %395 = sbr.rel (0) target = $region57
    $region56: #{tpu_custom_call.1} parent=1 // pred_region
      %s397 = ssub.s32 128, 128
      %398 = vsyncadd [#allocation17], %s397
      %s400 = sshll.u32 [#allocation16], 4
      %s401 = int_to_ptr.vmem [resolvable:$true] %s400
      %403 = dma.vmem_to_hbm [thread:$0]  %s401, 128, %s8, [#allocation17]
    $region57: #{tpu_custom_call.1} parent=1 // pred_fallthru
      _
    // Predicated region
    $region58: #{tpu_custom_call.1} parent=1 // pred_check
      _
    $region59: #{tpu_custom_call.1} parent=1 // pred_check_branch
      %405 = sbr.rel (0) target = $region61
    $region60: #{tpu_custom_call.1} parent=1 // pred_region
      %406 = dma.done [#allocation6], 512
    $region61: #{tpu_custom_call.1} parent=1 // pred_fallthru
      _
    // Predicated region
    $region62: #{tpu_custom_call.1} parent=1 // pred_check
      _
    $region63: #{tpu_custom_call.1} parent=1 // pred_check_branch
      %408 = sbr.rel (0) target = $region65
    $region64: #{tpu_custom_call.1} parent=1 // pred_region
      %409 = dma.done [#allocation17], 128
    $region65: #{tpu_custom_call.1} parent=1 // pred_fallthru
      _
    %410 = vsyncpa [#allocation5], 1
    %411 = vsyncpa [#allocation8], 1
    %412 = vsyncpa [#allocation11], 1
    %413 = vsyncpa [#allocation14], 1
    %414 = vsyncpa [#allocation6], 1
    %415 = vsyncpa [#allocation17], 1

</llo_original>
